<compile_context>
chip_gen: v5e
topology: v5e:2x2
jax: 0.10.0
libtpu: 0.0.40
codegen_flags: <defaults>
</compile_context>

<pallas_src>
import functools

import jax
import jax.numpy as jnp
from jax import lax
from jax.experimental import pallas as pl
from jax.experimental.pallas import tpu as pltpu

INVARIANCE_TERM = 25.0
VARIANCE_TERM = 25.0
COVARIANCE_TERM = 1.0
EPS = 1e-5


def _round_up(v, m):
    return ((v + m - 1) // m) * m


def _vmem_capacity_bytes():
    """Physical VMEM capacity (per core); conservative fallback if unknown."""
    try:
        info = pltpu.get_tpu_info()
        cap = getattr(info, "vmem_capacity_bytes", None)
        if cap:
            return int(cap)
    except Exception:
        pass
    return 64 << 20  # v7x-safe fallback


def _make_vic_kernel(B, D, Dp, TB, eps, inv_w, var_w, cov_w, need_row_mask):
    """B, D are the true (unpadded) sizes; Dp the lane-padded feature dim."""
    inv_b = 1.0 / B
    inv_bm1 = 1.0 / (B - 1)

    def kernel(x_ref, y_ref, out_ref, sx_ref, sy_ref, sdd_ref, gx_ref, gy_ref):
        k = pl.program_id(0)

        # ---- init accumulators on the first grid step ---------------------
        @pl.when(k == 0)
        def _init():
            sx_ref[...] = jnp.zeros_like(sx_ref)
            sy_ref[...] = jnp.zeros_like(sy_ref)
            sdd_ref[...] = jnp.zeros_like(sdd_ref)
            gx_ref[...] = jnp.zeros_like(gx_ref)
            gy_ref[...] = jnp.zeros_like(gy_ref)

        # Tiles stay in the caller's dtype (bf16 goes straight to the MXU).
        x_raw = x_ref[...]                          # (TB, Dp)
        y_raw = y_ref[...]

        if need_row_mask:  # static: only generated when B % TB != 0
            # Zero out-of-range rows of the (clipped) last tile; cheap VPU
            # select per step, only emitted for ragged batches.
            row = lax.broadcasted_iota(jnp.int32, (TB, 1), 0) + k * TB
            rmask = row < B
            x_raw = jnp.where(rmask, x_raw, jnp.zeros_like(x_raw))
            y_raw = jnp.where(rmask, y_raw, jnp.zeros_like(y_raw))

        xf = x_raw.astype(jnp.float32)
        yf = y_raw.astype(jnp.float32)

        # ---- streaming accumulation ---------------------------------------
        d = xf - yf
        sdd_ref[...] += jnp.sum(d * d, axis=0, keepdims=True)       # (1, Dp)
        sx_ref[...] += jnp.sum(xf, axis=0, keepdims=True)           # (1, Dp)
        sy_ref[...] += jnp.sum(yf, axis=0, keepdims=True)           # (1, Dp)

        # Gram matrices on the MXU in the input dtype, f32 accumulation.
        gx_ref[...] += lax.dot_general(
            x_raw, x_raw, (((0,), (0,)), ((), ())),
            preferred_element_type=jnp.float32)
        gy_ref[...] += lax.dot_general(
            y_raw, y_raw, (((0,), (0,)), ((), ())),
            preferred_element_type=jnp.float32)

        # ---- finalize on the last grid step --------------------------------
        @pl.when(k == pl.num_programs(0) - 1)
        def _finalize():
            lane = lax.broadcasted_iota(jnp.int32, (1, Dp), 1)
            valid = lane < D                   # mask padded feature lanes
            row_i = lax.broadcasted_iota(jnp.int32, (Dp, Dp), 0)
            col_i = lax.broadcasted_iota(jnp.int32, (Dp, Dp), 1)
            diag = row_i == col_i

            def branch(s_ref, g_ref):
                g = g_ref[...]                 # (Dp, Dp) f32
                s = s_ref[...]                 # (1, Dp) column sums
                mu = s * inv_b                 # (1, Dp) column means

                # Per-feature sum of squares comes straight off diag(G).
                sum_sq = jnp.sum(jnp.where(diag, g, 0.0), axis=0,
                                 keepdims=True)                     # (1, Dp)
                var = (sum_sq - s * mu) * inv_bm1                   # diag(cov)
                std = jnp.sqrt(var + eps)
                v_term = jnp.sum(
                    jnp.where(valid, jnp.maximum(1.0 - std, 0.0), 0.0)) / D

                # sum(cov^2) without materializing cov or mu*mu^T:
                #   cov = (G - B mu mu^T)/(B-1)
                #   sum(cov^2) = (sum(G^2) - 2B mu^T G mu
                #                 + B^2 (mu^T mu)^2) / (B-1)^2
                sum_g2 = jnp.sum(g * g)
                mu_g = lax.dot_general(        # (1, Dp) matvec, finalize-only
                    mu, g, (((1,), (0,)), ((), ())),
                    preferred_element_type=jnp.float32)
                quad = jnp.sum(mu_g * mu)      # mu^T G mu
                mu2 = jnp.sum(mu * mu)         # mu^T mu
                sum_cov2 = ((sum_g2 - 2.0 * B * quad + (B * mu2) ** 2)
                            * (inv_bm1 * inv_bm1))
                # off-diagonal: subtract sum(diag(cov)^2) == sum(var^2);
                # padded features have var == 0 and contribute nothing.
                c_term = (sum_cov2 - jnp.sum(var * var)) / D
                return v_term, c_term

            vx, cx = branch(sx_ref, gx_ref)
            vy, cy = branch(sy_ref, gy_ref)

            inv_loss = jnp.sum(sdd_ref[...]) / (B * D)
            var_loss = (vx + vy) * 0.5
            cov_loss = cx + cy
            total = inv_w * inv_loss + var_w * var_loss + cov_w * cov_loss

            # Pack [total, inv, var, cov] into one lane-dense (1, 128) store.
            lane_o = lax.broadcasted_iota(jnp.int32, (1, 128), 1)
            out = jnp.where(lane_o == 0, total, 0.0)
            out = jnp.where(lane_o == 1, inv_loss, out)
            out = jnp.where(lane_o == 2, var_loss, out)
            out = jnp.where(lane_o == 3, cov_loss, out)
            out_ref[...] = out.astype(jnp.float32)

    return kernel


@functools.partial(jax.jit, static_argnames=("batch_tile",))
def vic_loss(x, y, *, batch_tile=512):
    assert x.shape == y.shape and x.ndim == 2, "2-D (B, D) inputs only"
    B, D = x.shape
    assert B >= 2, "VICLoss needs batch >= 2 (unbiased variance / covariance)"

    # Lane padding only when the feature dim is not 128-aligned.
    Dp = _round_up(D, 128)
    if Dp != D:
        x = jnp.pad(x, ((0, 0), (0, Dp - D)))
        y = jnp.pad(y, ((0, 0), (0, Dp - D)))

    # Batch tiling: no HBM batch padding; ragged tails are masked in-kernel.
    if B <= batch_tile:
        TB = B                                   # single full-dim block
        need_row_mask = False
    else:
        TB = max(8, (batch_tile // 8) * 8)       # sublane-aligned tile
        need_row_mask = (B % TB != 0)
    grid = (pl.cdiv(B, TB),)

    kernel = _make_vic_kernel(B=B, D=D, Dp=Dp, TB=TB, eps=EPS,
                              inv_w=INVARIANCE_TERM, var_w=VARIANCE_TERM,
                              cov_w=COVARIANCE_TERM,
                              need_row_mask=need_row_mask)

    # VMEM budget: 2 inputs x double-buffered tiles (caller dtype) + f32
    # accumulators + finalize temporaries + slack, capped at physical VMEM
    # minus Mosaic headroom (so v5e/v6e use >64 MiB, v7x keeps headroom).
    itemsize = jnp.dtype(x.dtype).itemsize
    tile_bytes = TB * Dp * itemsize
    scratch_bytes = 2 * Dp * Dp * 4 + 3 * Dp * 4
    finalize_tmp = Dp * Dp * 4
    vmem_est = 2 * 2 * tile_bytes + scratch_bytes + finalize_tmp + (2 << 20)
    budget = _vmem_capacity_bytes() - (8 << 20)
    vmem_limit = int(min(max(vmem_est, 32 << 20), budget))

    cost = pl.CostEstimate(
        flops=int(4 * B * Dp * Dp + 10 * B * Dp + 8 * Dp * Dp),
        transcendentals=int(2 * Dp),
        bytes_accessed=int(2 * B * Dp * itemsize + 128 * 4),
    )

    out = pl.pallas_call(
        kernel,
        out_shape=jax.ShapeDtypeStruct((1, 128), jnp.float32),
        grid_spec=pltpu.PrefetchScalarGridSpec(
            num_scalar_prefetch=0,
            grid=grid,
            in_specs=[pl.BlockSpec((TB, Dp), lambda k: (k, 0)),
                      pl.BlockSpec((TB, Dp), lambda k: (k, 0))],
            out_specs=pl.BlockSpec((1, 128), lambda k: (0, 0)),
            scratch_shapes=[
                pltpu.VMEM((1, Dp), jnp.float32),    # sum x
                pltpu.VMEM((1, Dp), jnp.float32),    # sum y
                pltpu.VMEM((1, Dp), jnp.float32),    # per-feature sum (x-y)^2
                pltpu.VMEM((Dp, Dp), jnp.float32),   # X^T X
                pltpu.VMEM((Dp, Dp), jnp.float32),   # Y^T Y
            ]),
        compiler_params=pltpu.CompilerParams(
            dimension_semantics=("arbitrary",),
            vmem_limit_bytes=vmem_limit),
        cost_estimate=cost,
    )(x, y)

    return out[0, 0], (out[0, 1], out[0, 2], out[0, 3])


def _reference(x, y):
    """Pure-JAX reference mirroring the PyTorch module (2-D inputs)."""
    x = x.astype(jnp.float32)
    y = y.astype(jnp.float32)
    B, D = x.shape
    inv = jnp.mean((x - y) ** 2)

    def var_term(a):
        std = jnp.sqrt(jnp.var(a, axis=0, ddof=1) + EPS)
        return jnp.mean(jnp.maximum(1.0 - std, 0.0))

    def cov_term(a):
        c = a - a.mean(axis=0)
        cov = jnp.einsum("bi,bj->ij", c, c,
                         precision=lax.Precision.HIGHEST) / (B - 1)
        mask = ~jnp.eye(D, dtype=bool)
        return jnp.sum(jnp.where(mask, cov, 0.0) ** 2) / D

    var_loss = (var_term(x) + var_term(y)) / 2.0
    cov_loss = cov_term(x) + cov_term(y)
    total = (INVARIANCE_TERM * inv + VARIANCE_TERM * var_loss
             + COVARIANCE_TERM * cov_loss)
    return total, (inv, var_loss, cov_loss)


def _check(got, want, rtol, atol):
    g_total, g_parts = got
    w_total, w_parts = want
    assert jnp.allclose(g_total, w_total, rtol=rtol, atol=atol), (g_total, w_total)
    for g, w in zip(g_parts, w_parts):
        assert jnp.allclose(g, w, rtol=rtol, atol=atol), (g, w)


if __name__ == "__main__":
    # Test 1: tiny single-tile shape, lane-padded features (D=32 -> Dp=128).
    kx, ky = jax.random.split(jax.random.PRNGKey(0))
    x = jax.random.normal(kx, (8, 32), dtype=jnp.float32)
    y = x + 0.1 * jax.random.normal(ky, (8, 32), dtype=jnp.float32)
    got1 = vic_loss(x, y)
    jax.block_until_ready(got1[0])
    _check(got1, _reference(x, y), rtol=2e-4, atol=2e-4)

    # Test 2: multi-tile batch accumulation (3 grid steps), padded features,
    # batch divisible by the tile (no row mask emitted).
    k2x, k2y = jax.random.split(jax.random.PRNGKey(1))
    x2 = jax.random.normal(k2x, (48, 160), dtype=jnp.float32)
    y2 = x2 + 0.05 * jax.random.normal(k2y, (48, 160), dtype=jnp.float32)
    got2 = vic_loss(x2, y2, batch_tile=16)
    jax.block_until_ready(got2[0])
    _check(got2, _reference(x2, y2), rtol=2e-4, atol=2e-4)

    # Test 3: ragged batch tail (in-kernel row mask, no HBM batch padding)
    # plus lane-padded features.
    k3x, k3y = jax.random.split(jax.random.PRNGKey(2))
    x3 = jax.random.normal(k3x, (50, 160), dtype=jnp.float32)
    y3 = x3 + 0.05 * jax.random.normal(k3y, (50, 160), dtype=jnp.float32)
    got3 = vic_loss(x3, y3, batch_tile=16)
    jax.block_until_ready(got3[0])
    _check(got3, _reference(x3, y3), rtol=2e-4, atol=2e-4)

    # Test 4: bf16 inputs streamed straight to the MXU (no f32 up-cast in HBM).
    k4x, k4y = jax.random.split(jax.random.PRNGKey(3))
    x4 = jax.random.normal(k4x, (64, 128), dtype=jnp.float32).astype(jnp.bfloat16)
    y4 = (x4.astype(jnp.float32)
          + 0.05 * jax.random.normal(k4y, (64, 128), dtype=jnp.float32)
          ).astype(jnp.bfloat16)
    got4 = vic_loss(x4, y4, batch_tile=32)
    jax.block_until_ready(got4[0])
    _check(got4, _reference(x4, y4), rtol=5e-3, atol=5e-3)

    print("KERNEL_OK")
</pallas_src>

<mosaic_0001>
module attributes {stable_mosaic.version = 11 : i64} {
  func.func @kernel(%arg0: i32, %arg1: memref<8x128xf32, #tpu.memory_space<vmem>>, %arg2: memref<8x128xf32, #tpu.memory_space<vmem>>, %arg3: memref<1x128xf32, #tpu.memory_space<vmem>>, %arg4: memref<1x128xf32, #tpu.memory_space<vmem>>, %arg5: memref<1x128xf32, #tpu.memory_space<vmem>>, %arg6: memref<1x128xf32, #tpu.memory_space<vmem>>, %arg7: memref<128x128xf32, #tpu.memory_space<vmem>>, %arg8: memref<128x128xf32, #tpu.memory_space<vmem>>) attributes {dimension_semantics = [#tpu.dimension_semantics<arbitrary>], iteration_bounds = array<i64: 1>, scalar_prefetch = 0 : i64, scratch_operands = 5 : i64, tpu.core_type = #tpu.core_type<tc>, window_params = [{transform_indices = @transform_0, window_bounds = array<i64: 8, 128>}, {transform_indices = @transform_1, window_bounds = array<i64: 8, 128>}, {pipeline_mode = #tpu.pipeline_mode<synchronous>, transform_indices = @transform_2, window_bounds = array<i64: 1, 128>}]} {
    %c0_i32 = arith.constant 0 : i32
    %0 = arith.cmpi eq, %arg0, %c0_i32 : i32
    %1 = arith.extui %0 : i1 to i32
    %c0_i32_0 = arith.constant 0 : i32
    %2 = arith.cmpi ne, %1, %c0_i32_0 : i32
    scf.if %2 {
      %cst_30 = arith.constant 0.000000e+00 : f32
      %33 = vector.broadcast %cst_30 : f32 to vector<1x128xf32>
      %c0_31 = arith.constant 0 : index
      %c0_32 = arith.constant 0 : index
      %34 = vector.load %arg4[%c0_31, %c0_32] : memref<1x128xf32, #tpu.memory_space<vmem>>, vector<1x128xf32>
      tpu.vector_store %arg4[%c0_31, %c0_32], %33 {strides = array<i32>} : memref<1x128xf32, #tpu.memory_space<vmem>>, vector<1x128xf32>,
      %cst_33 = arith.constant 0.000000e+00 : f32
      %35 = vector.broadcast %cst_33 : f32 to vector<1x128xf32>
      %c0_34 = arith.constant 0 : index
      %c0_35 = arith.constant 0 : index
      %36 = vector.load %arg5[%c0_34, %c0_35] : memref<1x128xf32, #tpu.memory_space<vmem>>, vector<1x128xf32>
      tpu.vector_store %arg5[%c0_34, %c0_35], %35 {strides = array<i32>} : memref<1x128xf32, #tpu.memory_space<vmem>>, vector<1x128xf32>,
      %cst_36 = arith.constant 0.000000e+00 : f32
      %37 = vector.broadcast %cst_36 : f32 to vector<1x128xf32>
      %c0_37 = arith.constant 0 : index
      %c0_38 = arith.constant 0 : index
      %38 = vector.load %arg6[%c0_37, %c0_38] : memref<1x128xf32, #tpu.memory_space<vmem>>, vector<1x128xf32>
      tpu.vector_store %arg6[%c0_37, %c0_38], %37 {strides = array<i32>} : memref<1x128xf32, #tpu.memory_space<vmem>>, vector<1x128xf32>,
      %cst_39 = arith.constant 0.000000e+00 : f32
      %39 = vector.broadcast %cst_39 : f32 to vector<128x128xf32>
      %c0_40 = arith.constant 0 : index
      %c0_41 = arith.constant 0 : index
      %40 = vector.load %arg7[%c0_40, %c0_41] : memref<128x128xf32, #tpu.memory_space<vmem>>, vector<128x128xf32>
      tpu.vector_store %arg7[%c0_40, %c0_41], %39 {strides = array<i32>} : memref<128x128xf32, #tpu.memory_space<vmem>>, vector<128x128xf32>,
      %cst_42 = arith.constant 0.000000e+00 : f32
      %41 = vector.broadcast %cst_42 : f32 to vector<128x128xf32>
      %c0_43 = arith.constant 0 : index
      %c0_44 = arith.constant 0 : index
      %42 = vector.load %arg8[%c0_43, %c0_44] : memref<128x128xf32, #tpu.memory_space<vmem>>, vector<128x128xf32>
      tpu.vector_store %arg8[%c0_43, %c0_44], %41 {strides = array<i32>} : memref<128x128xf32, #tpu.memory_space<vmem>>, vector<128x128xf32>,
    } else {
    }
    %c0 = arith.constant 0 : index
    %c0_1 = arith.constant 0 : index
    %3 = vector.load %arg1[%c0, %c0_1] : memref<8x128xf32, #tpu.memory_space<vmem>>, vector<8x128xf32>
    %c0_2 = arith.constant 0 : index
    %c0_3 = arith.constant 0 : index
    %4 = vector.load %arg2[%c0_2, %c0_3] : memref<8x128xf32, #tpu.memory_space<vmem>>, vector<8x128xf32>
    %5 = arith.subf %3, %4 : vector<8x128xf32>
    %c0_4 = arith.constant 0 : index
    %c0_5 = arith.constant 0 : index
    %6 = vector.load %arg6[%c0_4, %c0_5] : memref<1x128xf32, #tpu.memory_space<vmem>>, vector<1x128xf32>
    %7 = arith.mulf %5, %5 : vector<8x128xf32>
    %cst = arith.constant dense<0.000000e+00> : vector<128xf32>
    %8 = vector.multi_reduction <add>, %7, %cst [0] : vector<8x128xf32> to vector<128xf32>
    %9 = vector.shape_cast %8 : vector<128xf32> to vector<1x128xf32>
    %10 = arith.addf %6, %9 : vector<1x128xf32>
    %c0_6 = arith.constant 0 : index
    %c0_7 = arith.constant 0 : index
    %11 = vector.load %arg6[%c0_6, %c0_7] : memref<1x128xf32, #tpu.memory_space<vmem>>, vector<1x128xf32>
    tpu.vector_store %arg6[%c0_6, %c0_7], %10 {strides = array<i32>} : memref<1x128xf32, #tpu.memory_space<vmem>>, vector<1x128xf32>,
    %c0_8 = arith.constant 0 : index
    %c0_9 = arith.constant 0 : index
    %12 = vector.load %arg4[%c0_8, %c0_9] : memref<1x128xf32, #tpu.memory_space<vmem>>, vector<1x128xf32>
    %cst_10 = arith.constant dense<0.000000e+00> : vector<128xf32>
    %13 = vector.multi_reduction <add>, %3, %cst_10 [0] : vector<8x128xf32> to vector<128xf32>
    %14 = vector.shape_cast %13 : vector<128xf32> to vector<1x128xf32>
    %15 = arith.addf %12, %14 : vector<1x128xf32>
    %c0_11 = arith.constant 0 : index
    %c0_12 = arith.constant 0 : index
    %16 = vector.load %arg4[%c0_11, %c0_12] : memref<1x128xf32, #tpu.memory_space<vmem>>, vector<1x128xf32>
    tpu.vector_store %arg4[%c0_11, %c0_12], %15 {strides = array<i32>} : memref<1x128xf32, #tpu.memory_space<vmem>>, vector<1x128xf32>,
    %c0_13 = arith.constant 0 : index
    %c0_14 = arith.constant 0 : index
    %17 = vector.load %arg5[%c0_13, %c0_14] : memref<1x128xf32, #tpu.memory_space<vmem>>, vector<1x128xf32>
    %cst_15 = arith.constant dense<0.000000e+00> : vector<128xf32>
    %18 = vector.multi_reduction <add>, %4, %cst_15 [0] : vector<8x128xf32> to vector<128xf32>
    %19 = vector.shape_cast %18 : vector<128xf32> to vector<1x128xf32>
    %20 = arith.addf %17, %19 : vector<1x128xf32>
    %c0_16 = arith.constant 0 : index
    %c0_17 = arith.constant 0 : index
    %21 = vector.load %arg5[%c0_16, %c0_17] : memref<1x128xf32, #tpu.memory_space<vmem>>, vector<1x128xf32>
    tpu.vector_store %arg5[%c0_16, %c0_17], %20 {strides = array<i32>} : memref<1x128xf32, #tpu.memory_space<vmem>>, vector<1x128xf32>,
    %c0_18 = arith.constant 0 : index
    %c0_19 = arith.constant 0 : index
    %22 = vector.load %arg7[%c0_18, %c0_19] : memref<128x128xf32, #tpu.memory_space<vmem>>, vector<128x128xf32>
    %cst_20 = arith.constant dense<0.000000e+00> : vector<128x128xf32>
    %23 = tpu.matmul %3, %3, %cst_20 {dimension_numbers = #tpu.dot_dimension_numbers<[0], [0], [1], [1], [0, 1, 1, 1], [], []>} : vector<8x128xf32>, vector<8x128xf32>, vector<128x128xf32> -> vector<128x128xf32>
    %24 = arith.addf %22, %23 : vector<128x128xf32>
    %c0_21 = arith.constant 0 : index
    %c0_22 = arith.constant 0 : index
    %25 = vector.load %arg7[%c0_21, %c0_22] : memref<128x128xf32, #tpu.memory_space<vmem>>, vector<128x128xf32>
    tpu.vector_store %arg7[%c0_21, %c0_22], %24 {strides = array<i32>} : memref<128x128xf32, #tpu.memory_space<vmem>>, vector<128x128xf32>,
    %c0_23 = arith.constant 0 : index
    %c0_24 = arith.constant 0 : index
    %26 = vector.load %arg8[%c0_23, %c0_24] : memref<128x128xf32, #tpu.memory_space<vmem>>, vector<128x128xf32>
    %cst_25 = arith.constant dense<0.000000e+00> : vector<128x128xf32>
    %27 = tpu.matmul %4, %4, %cst_25 {dimension_numbers = #tpu.dot_dimension_numbers<[0], [0], [1], [1], [0, 1, 1, 1], [], []>} : vector<8x128xf32>, vector<8x128xf32>, vector<128x128xf32> -> vector<128x128xf32>
    %28 = arith.addf %26, %27 : vector<128x128xf32>
    %c0_26 = arith.constant 0 : index
    %c0_27 = arith.constant 0 : index
    %29 = vector.load %arg8[%c0_26, %c0_27] : memref<128x128xf32, #tpu.memory_space<vmem>>, vector<128x128xf32>
    tpu.vector_store %arg8[%c0_26, %c0_27], %28 {strides = array<i32>} : memref<128x128xf32, #tpu.memory_space<vmem>>, vector<128x128xf32>,
    %c0_i32_28 = arith.constant 0 : i32
    %30 = arith.cmpi eq, %arg0, %c0_i32_28 : i32
    %31 = arith.extui %30 : i1 to i32
    %c0_i32_29 = arith.constant 0 : i32
    %32 = arith.cmpi ne, %31, %c0_i32_29 : i32
    scf.if %32 {
      %33 = tpu.iota {dimensions = array<i32: 1>} : vector<1x128xi32>
      %c32_i32 = arith.constant 32 : i32
      %34 = vector.broadcast %c32_i32 : i32 to vector<1x128xi32>
      %35 = arith.cmpi slt, %33, %34 : vector<1x128xi32>
      %36 = tpu.iota {dimensions = array<i32: 0>} : vector<128x128xi32>
      %37 = tpu.iota {dimensions = array<i32: 1>} : vector<128x128xi32>
      %38 = arith.cmpi eq, %36, %37 : vector<128x128xi32>
      %c0_30 = arith.constant 0 : index
      %c0_31 = arith.constant 0 : index
      %39 = vector.load %arg7[%c0_30, %c0_31] : memref<128x128xf32, #tpu.memory_space<vmem>>, vector<128x128xf32>
      %c0_32 = arith.constant 0 : index
      %c0_33 = arith.constant 0 : index
      %40 = vector.load %arg4[%c0_32, %c0_33] : memref<1x128xf32, #tpu.memory_space<vmem>>, vector<1x128xf32>
      %cst_34 = arith.constant 1.250000e-01 : f32
      %41 = vector.broadcast %cst_34 : f32 to vector<1x128xf32>
      %42 = arith.mulf %40, %41 : vector<1x128xf32>
      %cst_35 = arith.constant 0.000000e+00 : f32
      %43 = vector.broadcast %cst_35 : f32 to vector<128x128xf32>
      %44 = arith.select %38, %39, %43 : vector<128x128xi1>, vector<128x128xf32>
      %cst_36 = arith.constant dense<0.000000e+00> : vector<128xf32>
      %45 = vector.multi_reduction <add>, %44, %cst_36 [0] : vector<128x128xf32> to vector<128xf32>
      %46 = vector.shape_cast %45 : vector<128xf32> to vector<1x128xf32>
      %47 = arith.mulf %40, %42 : vector<1x128xf32>
      %48 = arith.subf %46, %47 : vector<1x128xf32>
      %cst_37 = arith.constant 0.142857149 : f32
      %49 = vector.broadcast %cst_37 : f32 to vector<1x128xf32>
      %50 = arith.mulf %48, %49 : vector<1x128xf32>
      %cst_38 = arith.constant 9.99999974E-6 : f32
      %51 = vector.broadcast %cst_38 : f32 to vector<1x128xf32>
      %52 = arith.addf %50, %51 : vector<1x128xf32>
      %53 = math.sqrt %52 : vector<1x128xf32>
      %cst_39 = arith.constant 1.000000e+00 : f32
      %54 = vector.broadcast %cst_39 : f32 to vector<1x128xf32>
      %55 = arith.subf %54, %53 : vector<1x128xf32>
      %cst_40 = arith.constant 0.000000e+00 : f32
      %56 = vector.broadcast %cst_40 : f32 to vector<1x128xf32>
      %57 = arith.maximumf %55, %56 : vector<1x128xf32>
      %cst_41 = arith.constant 0.000000e+00 : f32
      %58 = vector.broadcast %cst_41 : f32 to vector<1x128xf32>
      %59 = arith.select %35, %57, %58 : vector<1x128xi1>, vector<1x128xf32>
      %60 = vector.shape_cast %59 : vector<1x128xf32> to vector<1x1x128xf32>
      %cst_42 = arith.constant dense<0.000000e+00> : vector<1xf32>
      %61 = vector.multi_reduction <add>, %60, %cst_42 [1, 2] : vector<1x1x128xf32> to vector<1xf32>
      %62 = vector.shape_cast %61 : vector<1xf32> to vector<1x1x1xf32>
      %63 = vector.extract %62[0, 0, 0] : f32 from vector<1x1x1xf32>
      %cst_43 = arith.constant 3.200000e+01 : f32
      %64 = arith.divf %63, %cst_43 : f32
      %65 = arith.mulf %39, %39 : vector<128x128xf32>
      %66 = vector.shape_cast %65 : vector<128x128xf32> to vector<1x128x128xf32>
      %cst_44 = arith.constant dense<0.000000e+00> : vector<1xf32>
      %67 = vector.multi_reduction <add>, %66, %cst_44 [1, 2] : vector<1x128x128xf32> to vector<1xf32>
      %68 = vector.shape_cast %67 : vector<1xf32> to vector<1x1x1xf32>
      %69 = vector.extract %68[0, 0, 0] : f32 from vector<1x1x1xf32>
      %cst_45 = arith.constant dense<0.000000e+00> : vector<1x128xf32>
      %70 = tpu.matmul %42, %39, %cst_45 {dimension_numbers = #tpu.dot_dimension_numbers<[1], [0], [0], [1], [0, 0, 1, 1], [], []>} : vector<1x128xf32>, vector<128x128xf32>, vector<1x128xf32> -> vector<1x128xf32>
      %71 = arith.mulf %70, %42 : vector<1x128xf32>
      %72 = vector.shape_cast %71 : vector<1x128xf32> to vector<1x1x128xf32>
      %cst_46 = arith.constant dense<0.000000e+00> : vector<1xf32>
      %73 = vector.multi_reduction <add>, %72, %cst_46 [1, 2] : vector<1x1x128xf32> to vector<1xf32>
      %74 = vector.shape_cast %73 : vector<1xf32> to vector<1x1x1xf32>
      %75 = vector.extract %74[0, 0, 0] : f32 from vector<1x1x1xf32>
      %76 = arith.mulf %42, %42 : vector<1x128xf32>
      %77 = vector.shape_cast %76 : vector<1x128xf32> to vector<1x1x128xf32>
      %cst_47 = arith.constant dense<0.000000e+00> : vector<1xf32>
      %78 = vector.multi_reduction <add>, %77, %cst_47 [1, 2] : vector<1x1x128xf32> to vector<1xf32>
      %79 = vector.shape_cast %78 : vector<1xf32> to vector<1x1x1xf32>
      %80 = vector.extract %79[0, 0, 0] : f32 from vector<1x1x1xf32>
      %cst_48 = arith.constant 1.600000e+01 : f32
      %81 = arith.mulf %cst_48, %75 : f32
      %82 = arith.subf %69, %81 : f32
      %cst_49 = arith.constant 8.000000e+00 : f32
      %83 = arith.mulf %cst_49, %80 : f32
      %84 = arith.mulf %83, %83 : f32
      %85 = arith.addf %82, %84 : f32
      %cst_50 = arith.constant 0.0204081628 : f32
      %86 = arith.mulf %85, %cst_50 : f32
      %87 = arith.mulf %50, %50 : vector<1x128xf32>
      %88 = vector.shape_cast %87 : vector<1x128xf32> to vector<1x1x128xf32>
      %cst_51 = arith.constant dense<0.000000e+00> : vector<1xf32>
      %89 = vector.multi_reduction <add>, %88, %cst_51 [1, 2] : vector<1x1x128xf32> to vector<1xf32>
      %90 = vector.shape_cast %89 : vector<1xf32> to vector<1x1x1xf32>
      %91 = vector.extract %90[0, 0, 0] : f32 from vector<1x1x1xf32>
      %92 = arith.subf %86, %91 : f32
      %cst_52 = arith.constant 3.200000e+01 : f32
      %93 = arith.divf %92, %cst_52 : f32
      %c0_53 = arith.constant 0 : index
      %c0_54 = arith.constant 0 : index
      %94 = vector.load %arg8[%c0_53, %c0_54] : memref<128x128xf32, #tpu.memory_space<vmem>>, vector<128x128xf32>
      %c0_55 = arith.constant 0 : index
      %c0_56 = arith.constant 0 : index
      %95 = vector.load %arg5[%c0_55, %c0_56] : memref<1x128xf32, #tpu.memory_space<vmem>>, vector<1x128xf32>
      %cst_57 = arith.constant 1.250000e-01 : f32
      %96 = vector.broadcast %cst_57 : f32 to vector<1x128xf32>
      %97 = arith.mulf %95, %96 : vector<1x128xf32>
      %cst_58 = arith.constant 0.000000e+00 : f32
      %98 = vector.broadcast %cst_58 : f32 to vector<128x128xf32>
      %99 = arith.select %38, %94, %98 : vector<128x128xi1>, vector<128x128xf32>
      %cst_59 = arith.constant dense<0.000000e+00> : vector<128xf32>
      %100 = vector.multi_reduction <add>, %99, %cst_59 [0] : vector<128x128xf32> to vector<128xf32>
      %101 = vector.shape_cast %100 : vector<128xf32> to vector<1x128xf32>
      %102 = arith.mulf %95, %97 : vector<1x128xf32>
      %103 = arith.subf %101, %102 : vector<1x128xf32>
      %cst_60 = arith.constant 0.142857149 : f32
      %104 = vector.broadcast %cst_60 : f32 to vector<1x128xf32>
      %105 = arith.mulf %103, %104 : vector<1x128xf32>
      %cst_61 = arith.constant 9.99999974E-6 : f32
      %106 = vector.broadcast %cst_61 : f32 to vector<1x128xf32>
      %107 = arith.addf %105, %106 : vector<1x128xf32>
      %108 = math.sqrt %107 : vector<1x128xf32>
      %cst_62 = arith.constant 1.000000e+00 : f32
      %109 = vector.broadcast %cst_62 : f32 to vector<1x128xf32>
      %110 = arith.subf %109, %108 : vector<1x128xf32>
      %cst_63 = arith.constant 0.000000e+00 : f32
      %111 = vector.broadcast %cst_63 : f32 to vector<1x128xf32>
      %112 = arith.maximumf %110, %111 : vector<1x128xf32>
      %cst_64 = arith.constant 0.000000e+00 : f32
      %113 = vector.broadcast %cst_64 : f32 to vector<1x128xf32>
      %114 = arith.select %35, %112, %113 : vector<1x128xi1>, vector<1x128xf32>
      %115 = vector.shape_cast %114 : vector<1x128xf32> to vector<1x1x128xf32>
      %cst_65 = arith.constant dense<0.000000e+00> : vector<1xf32>
      %116 = vector.multi_reduction <add>, %115, %cst_65 [1, 2] : vector<1x1x128xf32> to vector<1xf32>
      %117 = vector.shape_cast %116 : vector<1xf32> to vector<1x1x1xf32>
      %118 = vector.extract %117[0, 0, 0] : f32 from vector<1x1x1xf32>
      %cst_66 = arith.constant 3.200000e+01 : f32
      %119 = arith.divf %118, %cst_66 : f32
      %120 = arith.mulf %94, %94 : vector<128x128xf32>
      %121 = vector.shape_cast %120 : vector<128x128xf32> to vector<1x128x128xf32>
      %cst_67 = arith.constant dense<0.000000e+00> : vector<1xf32>
      %122 = vector.multi_reduction <add>, %121, %cst_67 [1, 2] : vector<1x128x128xf32> to vector<1xf32>
      %123 = vector.shape_cast %122 : vector<1xf32> to vector<1x1x1xf32>
      %124 = vector.extract %123[0, 0, 0] : f32 from vector<1x1x1xf32>
      %cst_68 = arith.constant dense<0.000000e+00> : vector<1x128xf32>
      %125 = tpu.matmul %97, %94, %cst_68 {dimension_numbers = #tpu.dot_dimension_numbers<[1], [0], [0], [1], [0, 0, 1, 1], [], []>} : vector<1x128xf32>, vector<128x128xf32>, vector<1x128xf32> -> vector<1x128xf32>
      %126 = arith.mulf %125, %97 : vector<1x128xf32>
      %127 = vector.shape_cast %126 : vector<1x128xf32> to vector<1x1x128xf32>
      %cst_69 = arith.constant dense<0.000000e+00> : vector<1xf32>
      %128 = vector.multi_reduction <add>, %127, %cst_69 [1, 2] : vector<1x1x128xf32> to vector<1xf32>
      %129 = vector.shape_cast %128 : vector<1xf32> to vector<1x1x1xf32>
      %130 = vector.extract %129[0, 0, 0] : f32 from vector<1x1x1xf32>
      %131 = arith.mulf %97, %97 : vector<1x128xf32>
      %132 = vector.shape_cast %131 : vector<1x128xf32> to vector<1x1x128xf32>
      %cst_70 = arith.constant dense<0.000000e+00> : vector<1xf32>
      %133 = vector.multi_reduction <add>, %132, %cst_70 [1, 2] : vector<1x1x128xf32> to vector<1xf32>
      %134 = vector.shape_cast %133 : vector<1xf32> to vector<1x1x1xf32>
      %135 = vector.extract %134[0, 0, 0] : f32 from vector<1x1x1xf32>
      %cst_71 = arith.constant 1.600000e+01 : f32
      %136 = arith.mulf %cst_71, %130 : f32
      %137 = arith.subf %124, %136 : f32
      %cst_72 = arith.constant 8.000000e+00 : f32
      %138 = arith.mulf %cst_72, %135 : f32
      %139 = arith.mulf %138, %138 : f32
      %140 = arith.addf %137, %139 : f32
      %cst_73 = arith.constant 0.0204081628 : f32
      %141 = arith.mulf %140, %cst_73 : f32
      %142 = arith.mulf %105, %105 : vector<1x128xf32>
      %143 = vector.shape_cast %142 : vector<1x128xf32> to vector<1x1x128xf32>
      %cst_74 = arith.constant dense<0.000000e+00> : vector<1xf32>
      %144 = vector.multi_reduction <add>, %143, %cst_74 [1, 2] : vector<1x1x128xf32> to vector<1xf32>
      %145 = vector.shape_cast %144 : vector<1xf32> to vector<1x1x1xf32>
      %146 = vector.extract %145[0, 0, 0] : f32 from vector<1x1x1xf32>
      %147 = arith.subf %141, %146 : f32
      %cst_75 = arith.constant 3.200000e+01 : f32
      %148 = arith.divf %147, %cst_75 : f32
      %c0_76 = arith.constant 0 : index
      %c0_77 = arith.constant 0 : index
      %149 = vector.load %arg6[%c0_76, %c0_77] : memref<1x128xf32, #tpu.memory_space<vmem>>, vector<1x128xf32>
      %150 = vector.shape_cast %149 : vector<1x128xf32> to vector<1x1x128xf32>
      %cst_78 = arith.constant dense<0.000000e+00> : vector<1xf32>
      %151 = vector.multi_reduction <add>, %150, %cst_78 [1, 2] : vector<1x1x128xf32> to vector<1xf32>
      %152 = vector.shape_cast %151 : vector<1xf32> to vector<1x1x1xf32>
      %153 = vector.extract %152[0, 0, 0] : f32 from vector<1x1x1xf32>
      %cst_79 = arith.constant 2.560000e+02 : f32
      %154 = arith.divf %153, %cst_79 : f32
      %155 = arith.addf %64, %119 : f32
      %cst_80 = arith.constant 5.000000e-01 : f32
      %156 = arith.mulf %155, %cst_80 : f32
      %157 = arith.addf %93, %148 : f32
      %cst_81 = arith.constant 2.500000e+01 : f32
      %158 = arith.mulf %cst_81, %154 : f32
      %cst_82 = arith.constant 2.500000e+01 : f32
      %159 = arith.mulf %cst_82, %156 : f32
      %160 = arith.addf %158, %159 : f32
      %cst_83 = arith.constant 1.000000e+00 : f32
      %161 = arith.mulf %cst_83, %157 : f32
      %162 = arith.addf %160, %161 : f32
      %163 = tpu.iota {dimensions = array<i32: 1>} : vector<1x128xi32>
      %c0_i32_84 = arith.constant 0 : i32
      %164 = vector.broadcast %c0_i32_84 : i32 to vector<1x128xi32>
      %165 = arith.cmpi eq, %163, %164 : vector<1x128xi32>
      %cst_85 = arith.constant 0.000000e+00 : f32
      %166 = vector.broadcast %162 : f32 to vector<1x128xf32>
      %167 = vector.broadcast %cst_85 : f32 to vector<1x128xf32>
      %168 = arith.select %165, %166, %167 : vector<1x128xi1>, vector<1x128xf32>
      %c1_i32 = arith.constant 1 : i32
      %169 = vector.broadcast %c1_i32 : i32 to vector<1x128xi32>
      %170 = arith.cmpi eq, %163, %169 : vector<1x128xi32>
      %171 = vector.broadcast %154 : f32 to vector<1x128xf32>
      %172 = arith.select %170, %171, %168 : vector<1x128xi1>, vector<1x128xf32>
      %c2_i32 = arith.constant 2 : i32
      %173 = vector.broadcast %c2_i32 : i32 to vector<1x128xi32>
      %174 = arith.cmpi eq, %163, %173 : vector<1x128xi32>
      %175 = vector.broadcast %156 : f32 to vector<1x128xf32>
      %176 = arith.select %174, %175, %172 : vector<1x128xi1>, vector<1x128xf32>
      %c3_i32 = arith.constant 3 : i32
      %177 = vector.broadcast %c3_i32 : i32 to vector<1x128xi32>
      %178 = arith.cmpi eq, %163, %177 : vector<1x128xi32>
      %179 = vector.broadcast %157 : f32 to vector<1x128xf32>
      %180 = arith.select %178, %179, %176 : vector<1x128xi1>, vector<1x128xf32>
      %c0_86 = arith.constant 0 : index
      %c0_87 = arith.constant 0 : index
      %181 = vector.load %arg3[%c0_86, %c0_87] : memref<1x128xf32, #tpu.memory_space<vmem>>, vector<1x128xf32>
      tpu.vector_store %arg3[%c0_86, %c0_87], %180 {strides = array<i32>} : memref<1x128xf32, #tpu.memory_space<vmem>>, vector<1x128xf32>,
    } else {
    }
    return
  }
  func.func @transform_0(%arg0: i32) -> (i32, i32) {
    %c0_i32 = arith.constant 0 : i32
    %c0_i32_0 = arith.constant 0 : i32
    return %arg0, %c0_i32 : i32, i32
  }
  func.func @transform_1(%arg0: i32) -> (i32, i32) {
    %c0_i32 = arith.constant 0 : i32
    %c0_i32_0 = arith.constant 0 : i32
    return %arg0, %c0_i32 : i32, i32
  }
  func.func @transform_2(%arg0: i32) -> (i32, i32) {
    %c0_i32 = arith.constant 0 : i32
    %c0_i32_0 = arith.constant 0 : i32
    %c0_i32_1 = arith.constant 0 : i32
    return %c0_i32, %c0_i32_0 : i32, i32
  }
}

</mosaic_0001>

<llo_original>
// kernel: vic_loss.1
$region0: #{vic_loss.1}
  #allocation0 [shape = 'u32[]', space=smem, size = 0x4, offset = 0x4, fixed_abs, tag = 'smem constant byte address 0x4 - core index']
  #allocation1 [shape = 'u32[72,128]{1,0:T(1,128)}', space=vmem, size = 0x9000, scoped, tag = 'internal scratch']
  #allocation2 [shape = 'f32[1,128]{1,0:T(1,128)}', space=vmem, size = 0x200, scoped, tag = 'scratch operand']
  #allocation3 [shape = 'f32[1,128]{1,0:T(1,128)}', space=vmem, size = 0x200, scoped, tag = 'scratch operand']
  #allocation4 [shape = 'f32[1,128]{1,0:T(1,128)}', space=vmem, size = 0x200, scoped, tag = 'scratch operand']
  #allocation5 [shape = 'f32[128,128]{1,0:T(8,128)}', space=vmem, size = 0x10000, scoped, tag = 'scratch operand']
  #allocation6 [shape = 'f32[128,128]{1,0:T(8,128)}', space=vmem, size = 0x10000, scoped, tag = 'scratch operand']
  %s0 = inlined_call_operand.vmem [shape: f32[8,128], index: 0, kind: input, shape index: {}]
  %s1 = inlined_call_operand.vmem [shape: f32[8,128], index: 1, kind: input, shape index: {}]
  %s2 = inlined_call_operand.vmem [shape: f32[1,128], index: 2, kind: output, shape index: {}]
  %s3 = sld [smem:[#allocation0]]
  $region26: #{vic_loss.1} parent=0
    _
  %s5 = ssub.s32 1, %s3
  %s6 = scalar_select 0, %s5, %s3
  // Predicated region
  $region2: #{vic_loss.1} parent=0 // pred_check
    _
  $region3: #{vic_loss.1} parent=0 // pred_check_branch
    %8 = sbr.rel (0) target = $region5
  $region4: #{vic_loss.1} parent=0 // pred_region
    _
  $region5: #{vic_loss.1} parent=0 // pred_fallthru
    _
  // Predicated region
  $region6: #{vic_loss.1} parent=0 // pred_check
    _
  $region7: #{vic_loss.1} parent=0 // pred_check_branch
    %10 = sbr.rel (0) target = $region9
  $region8: #{vic_loss.1} parent=0 // pred_region
    _
  $region9: #{vic_loss.1} parent=0 // pred_fallthru
    _
  %p11 = scmp.eq.s32.totalorder 0, 0
  // Predicated region
  $region10: #{vic_loss.1} parent=0 // pred_check
    %p12 = pneg %p11
  $region11: #{vic_loss.1} parent=0 // pred_check_branch
    %14 = sbr.rel (%p12) target = $region13
  $region12: #{vic_loss.1} parent=0 // pred_region
    %15 = vst [vmem:[#allocation2] sm:$0x1] 0.0
    %16 = vst [vmem:[#allocation3] sm:$0x1] 0.0
    %17 = vst [vmem:[#allocation4] sm:$0x1] 0.0
    %18 = vst [vmem:[#allocation5] sm:$0xff] 0.0
    %19 = vst [vmem:[#allocation5 + $0x8] sm:$0xff] 0.0
    %20 = vst [vmem:[#allocation5 + $0x10] sm:$0xff] 0.0
    %21 = vst [vmem:[#allocation5 + $0x18] sm:$0xff] 0.0
    %22 = vst [vmem:[#allocation5 + $0x20] sm:$0xff] 0.0
    %23 = vst [vmem:[#allocation5 + $0x28] sm:$0xff] 0.0
    %24 = vst [vmem:[#allocation5 + $0x30] sm:$0xff] 0.0
    %25 = vst [vmem:[#allocation5 + $0x38] sm:$0xff] 0.0
    %26 = vst [vmem:[#allocation5 + $0x40] sm:$0xff] 0.0
    %27 = vst [vmem:[#allocation5 + $0x48] sm:$0xff] 0.0
    %28 = vst [vmem:[#allocation5 + $0x50] sm:$0xff] 0.0
    %29 = vst [vmem:[#allocation5 + $0x58] sm:$0xff] 0.0
    %30 = vst [vmem:[#allocation5 + $0x60] sm:$0xff] 0.0
    %31 = vst [vmem:[#allocation5 + $0x68] sm:$0xff] 0.0
    %32 = vst [vmem:[#allocation5 + $0x70] sm:$0xff] 0.0
    %33 = vst [vmem:[#allocation5 + $0x78] sm:$0xff] 0.0
    %34 = vst [vmem:[#allocation6] sm:$0xff] 0.0
    %35 = vst [vmem:[#allocation6 + $0x8] sm:$0xff] 0.0
    %36 = vst [vmem:[#allocation6 + $0x10] sm:$0xff] 0.0
    %37 = vst [vmem:[#allocation6 + $0x18] sm:$0xff] 0.0
    %38 = vst [vmem:[#allocation6 + $0x20] sm:$0xff] 0.0
    %39 = vst [vmem:[#allocation6 + $0x28] sm:$0xff] 0.0
    %40 = vst [vmem:[#allocation6 + $0x30] sm:$0xff] 0.0
    %41 = vst [vmem:[#allocation6 + $0x38] sm:$0xff] 0.0
    %42 = vst [vmem:[#allocation6 + $0x40] sm:$0xff] 0.0
    %43 = vst [vmem:[#allocation6 + $0x48] sm:$0xff] 0.0
    %44 = vst [vmem:[#allocation6 + $0x50] sm:$0xff] 0.0
    %45 = vst [vmem:[#allocation6 + $0x58] sm:$0xff] 0.0
    %46 = vst [vmem:[#allocation6 + $0x60] sm:$0xff] 0.0
    %47 = vst [vmem:[#allocation6 + $0x68] sm:$0xff] 0.0
    %48 = vst [vmem:[#allocation6 + $0x70] sm:$0xff] 0.0
    %49 = vst [vmem:[#allocation6 + $0x78] sm:$0xff] 0.0
  $region13: #{vic_loss.1} parent=0 // pred_fallthru
    _
  %v50 = vld [vmem:[%s0] sm:$0xff]
  %v51 = vld [vmem:[%s1] sm:$0xff]
  %v52 = vsub.f32 %v50, %v51
  %v53 = vld [vmem:[#allocation4] sm:$0x1]
  %v54 = vmul.f32 %v52, %v52
  %v55 = vrot.slane %v54, 4
  %v56 = vadd.f32 %v54, %v55
  %v57 = vrot.slane %v56, 2
  %v58 = vadd.f32 %v56, %v57
  %v59 = vrot.slane %v58, 1
  %v60 = vadd.f32 %v58, %v59
  %v61 = vadd.f32 %v53, %v60
  %62 = vst [vmem:[#allocation4] sm:$0x1] %v61
  %v63 = vld [vmem:[#allocation2] sm:$0x1]
  %v64 = vrot.slane %v50, 4
  %v65 = vadd.f32 %v50, %v64
  %v66 = vrot.slane %v65, 2
  %v67 = vadd.f32 %v65, %v66
  %v68 = vrot.slane %v67, 1
  %v69 = vadd.f32 %v67, %v68
  %v70 = vadd.f32 %v63, %v69
  %71 = vst [vmem:[#allocation2] sm:$0x1] %v70
  %v72 = vld [vmem:[#allocation3] sm:$0x1]
  %v73 = vrot.slane %v51, 4
  %v74 = vadd.f32 %v51, %v73
  %v75 = vrot.slane %v74, 2
  %v76 = vadd.f32 %v74, %v75
  %v77 = vrot.slane %v76, 1
  %v78 = vadd.f32 %v76, %v77
  %v79 = vadd.f32 %v72, %v78
  %80 = vst [vmem:[#allocation3] sm:$0x1] %v79
  %v81 = vld [vmem:[#allocation5] sm:$0xff]
  %v82 = vld [vmem:[#allocation5 + $0x8] sm:$0xff]
  %v83 = vld [vmem:[#allocation5 + $0x10] sm:$0xff]
  %v84 = vld [vmem:[#allocation5 + $0x18] sm:$0xff]
  %v85 = vld [vmem:[#allocation5 + $0x20] sm:$0xff]
  %v86 = vld [vmem:[#allocation5 + $0x28] sm:$0xff]
  %v87 = vld [vmem:[#allocation5 + $0x30] sm:$0xff]
  %v88 = vld [vmem:[#allocation5 + $0x38] sm:$0xff]
  %v89 = vld [vmem:[#allocation5 + $0x40] sm:$0xff]
  %v90 = vld [vmem:[#allocation5 + $0x48] sm:$0xff]
  %v91 = vld [vmem:[#allocation5 + $0x50] sm:$0xff]
  %v92 = vld [vmem:[#allocation5 + $0x58] sm:$0xff]
  %v93 = vld [vmem:[#allocation5 + $0x60] sm:$0xff]
  %v94 = vld [vmem:[#allocation5 + $0x68] sm:$0xff]
  %v95 = vld [vmem:[#allocation5 + $0x70] sm:$0xff]
  %v96 = vld [vmem:[#allocation5 + $0x78] sm:$0xff]
  %97 = vxpose.xlu0.b32.start [1/16] %v50, 128
  %98 = vxpose.xlu0.b32.cont [2/16] 0.0, 128
  %99 = vxpose.xlu0.b32.cont [3/16] 0.0, 128
  %100 = vxpose.xlu0.b32.cont [4/16] 0.0, 128
  %101 = vxpose.xlu0.b32.cont [5/16] 0.0, 128
  %102 = vxpose.xlu0.b32.cont [6/16] 0.0, 128
  %103 = vxpose.xlu0.b32.cont [7/16] 0.0, 128
  %104 = vxpose.xlu0.b32.cont [8/16] 0.0, 128
  %105 = vxpose.xlu0.b32.cont [9/16] 0.0, 128
  %106 = vxpose.xlu0.b32.cont [10/16] 0.0, 128
  %107 = vxpose.xlu0.b32.cont [11/16] 0.0, 128
  %108 = vxpose.xlu0.b32.cont [12/16] 0.0, 128
  %109 = vxpose.xlu0.b32.cont [13/16] 0.0, 128
  %110 = vxpose.xlu0.b32.cont [14/16] 0.0, 128
  %111 = vxpose.xlu0.b32.cont [15/16] 0.0, 128
  %112 = vxpose.xlu0.b32.end [16/16] 0.0, 128
  %v113 = vpop.trf.xlu0
  %v114 = vpop.trf.xlu0
  %v115 = vpop.trf.xlu0
  %v116 = vpop.trf.xlu0
  %v117 = vpop.trf.xlu0
  %v118 = vpop.trf.xlu0
  %v119 = vpop.trf.xlu0
  %v120 = vpop.trf.xlu0
  %v121 = vpop.trf.xlu0
  %v122 = vpop.trf.xlu0
  %v123 = vpop.trf.xlu0
  %v124 = vpop.trf.xlu0
  %v125 = vpop.trf.xlu0
  %v126 = vpop.trf.xlu0
  %v127 = vpop.trf.xlu0
  %v128 = vpop.trf.xlu0
  %vm129 = vcmask 64512
  %v131 = vsel %vm129, %v113, 0
  %v134 = vsel %vm129, %v114, 0
  %v137 = vsel %vm129, %v115, 0
  %v140 = vsel %vm129, %v116, 0
  %v143 = vsel %vm129, %v117, 0
  %v146 = vsel %vm129, %v118, 0
  %v149 = vsel %vm129, %v119, 0
  %v152 = vsel %vm129, %v120, 0
  %v155 = vsel %vm129, %v121, 0
  %v158 = vsel %vm129, %v122, 0
  %v161 = vsel %vm129, %v123, 0
  %v164 = vsel %vm129, %v124, 0
  %v167 = vsel %vm129, %v125, 0
  %v170 = vsel %vm129, %v126, 0
  %v173 = vsel %vm129, %v127, 0
  %v176 = vsel %vm129, %v128, 0
  %178 = vmatpush.msra.mxu0 0.0
  %179 = vmatpush.msra.mxu0 0.0
  %180 = vmatpush.msra.mxu0 0.0
  %181 = vmatpush.msra.mxu0 0.0
  %182 = vmatpush.msra.mxu0 0.0
  %183 = vmatpush.msra.mxu0 0.0
  %184 = vmatpush.msra.mxu0 0.0
  %185 = vmatpush.msra.mxu0 0.0
  %186 = vmatpush.msra.mxu0 0.0
  %187 = vmatpush.msra.mxu0 0.0
  %188 = vmatpush.msra.mxu0 0.0
  %189 = vmatpush.msra.mxu0 0.0
  %190 = vmatpush.msra.mxu0 0.0
  %191 = vmatpush.msra.mxu0 0.0
  %192 = vmatpush.msra.mxu0 0.0
  %193 = vmatpush.msra.mxu0 %v50
  %194 = vmatmul.f32.gmra.mxu0 %v131
  %v195 = vpop.f32.mrf.mxu0
  %v196 = vadd.f32 0.0, %v195
  %197 = vmatmul.f32.gmra.mxu0 %v134
  %v198 = vpop.f32.mrf.mxu0
  %v199 = vadd.f32 0.0, %v198
  %200 = vmatmul.f32.gmra.mxu0 %v137
  %v201 = vpop.f32.mrf.mxu0
  %v202 = vadd.f32 0.0, %v201
  %203 = vmatmul.f32.gmra.mxu0 %v140
  %v204 = vpop.f32.mrf.mxu0
  %v205 = vadd.f32 0.0, %v204
  %206 = vmatmul.f32.gmra.mxu0 %v143
  %v207 = vpop.f32.mrf.mxu0
  %v208 = vadd.f32 0.0, %v207
  %209 = vmatmul.f32.gmra.mxu0 %v146
  %v210 = vpop.f32.mrf.mxu0
  %v211 = vadd.f32 0.0, %v210
  %212 = vmatmul.f32.gmra.mxu0 %v149
  %v213 = vpop.f32.mrf.mxu0
  %v214 = vadd.f32 0.0, %v213
  %215 = vmatmul.f32.gmra.mxu0 %v152
  %v216 = vpop.f32.mrf.mxu0
  %v217 = vadd.f32 0.0, %v216
  %218 = vmatmul.f32.gmra.mxu0 %v155
  %v219 = vpop.f32.mrf.mxu0
  %v220 = vadd.f32 0.0, %v219
  %221 = vmatmul.f32.gmra.mxu0 %v158
  %v222 = vpop.f32.mrf.mxu0
  %v223 = vadd.f32 0.0, %v222
  %224 = vmatmul.f32.gmra.mxu0 %v161
  %v225 = vpop.f32.mrf.mxu0
  %v226 = vadd.f32 0.0, %v225
  %227 = vmatmul.f32.gmra.mxu0 %v164
  %v228 = vpop.f32.mrf.mxu0
  %v229 = vadd.f32 0.0, %v228
  %230 = vmatmul.f32.gmra.mxu0 %v167
  %v231 = vpop.f32.mrf.mxu0
  %v232 = vadd.f32 0.0, %v231
  %233 = vmatmul.f32.gmra.mxu0 %v170
  %v234 = vpop.f32.mrf.mxu0
  %v235 = vadd.f32 0.0, %v234
  %236 = vmatmul.f32.gmra.mxu0 %v173
  %v237 = vpop.f32.mrf.mxu0
  %v238 = vadd.f32 0.0, %v237
  %239 = vmatmul.f32.gmra.mxu0 %v176
  %v240 = vpop.f32.mrf.mxu0
  %v241 = vadd.f32 0.0, %v240
  %242 = vdwg.mxu0
  %v243 = vadd.f32 %v81, %v196
  %v244 = vadd.f32 %v82, %v199
  %v245 = vadd.f32 %v83, %v202
  %v246 = vadd.f32 %v84, %v205
  %v247 = vadd.f32 %v85, %v208
  %v248 = vadd.f32 %v86, %v211
  %v249 = vadd.f32 %v87, %v214
  %v250 = vadd.f32 %v88, %v217
  %v251 = vadd.f32 %v89, %v220
  %v252 = vadd.f32 %v90, %v223
  %v253 = vadd.f32 %v91, %v226
  %v254 = vadd.f32 %v92, %v229
  %v255 = vadd.f32 %v93, %v232
  %v256 = vadd.f32 %v94, %v235
  %v257 = vadd.f32 %v95, %v238
  %v258 = vadd.f32 %v96, %v241
  %259 = vst [vmem:[#allocation5] sm:$0xff] %v243
  %260 = vst [vmem:[#allocation5 + $0x8] sm:$0xff] %v244
  %261 = vst [vmem:[#allocation5 + $0x10] sm:$0xff] %v245
  %262 = vst [vmem:[#allocation5 + $0x18] sm:$0xff] %v246
  %263 = vst [vmem:[#allocation5 + $0x20] sm:$0xff] %v247
  %264 = vst [vmem:[#allocation5 + $0x28] sm:$0xff] %v248
  %265 = vst [vmem:[#allocation5 + $0x30] sm:$0xff] %v249
  %266 = vst [vmem:[#allocation5 + $0x38] sm:$0xff] %v250
  %267 = vst [vmem:[#allocation5 + $0x40] sm:$0xff] %v251
  %268 = vst [vmem:[#allocation5 + $0x48] sm:$0xff] %v252
  %269 = vst [vmem:[#allocation5 + $0x50] sm:$0xff] %v253
  %270 = vst [vmem:[#allocation5 + $0x58] sm:$0xff] %v254
  %271 = vst [vmem:[#allocation5 + $0x60] sm:$0xff] %v255
  %272 = vst [vmem:[#allocation5 + $0x68] sm:$0xff] %v256
  %273 = vst [vmem:[#allocation5 + $0x70] sm:$0xff] %v257
  %274 = vst [vmem:[#allocation5 + $0x78] sm:$0xff] %v258
  %v275 = vld [vmem:[#allocation6] sm:$0xff]
  %v276 = vld [vmem:[#allocation6 + $0x8] sm:$0xff]
  %v277 = vld [vmem:[#allocation6 + $0x10] sm:$0xff]
  %v278 = vld [vmem:[#allocation6 + $0x18] sm:$0xff]
  %v279 = vld [vmem:[#allocation6 + $0x20] sm:$0xff]
  %v280 = vld [vmem:[#allocation6 + $0x28] sm:$0xff]
  %v281 = vld [vmem:[#allocation6 + $0x30] sm:$0xff]
  %v282 = vld [vmem:[#allocation6 + $0x38] sm:$0xff]
  %v283 = vld [vmem:[#allocation6 + $0x40] sm:$0xff]
  %v284 = vld [vmem:[#allocation6 + $0x48] sm:$0xff]
  %v285 = vld [vmem:[#allocation6 + $0x50] sm:$0xff]
  %v286 = vld [vmem:[#allocation6 + $0x58] sm:$0xff]
  %v287 = vld [vmem:[#allocation6 + $0x60] sm:$0xff]
  %v288 = vld [vmem:[#allocation6 + $0x68] sm:$0xff]
  %v289 = vld [vmem:[#allocation6 + $0x70] sm:$0xff]
  %v290 = vld [vmem:[#allocation6 + $0x78] sm:$0xff]
  %291 = vxpose.xlu0.b32.start [1/16] %v51, 128
  %292 = vxpose.xlu0.b32.cont [2/16] 0.0, 128
  %293 = vxpose.xlu0.b32.cont [3/16] 0.0, 128
  %294 = vxpose.xlu0.b32.cont [4/16] 0.0, 128
  %295 = vxpose.xlu0.b32.cont [5/16] 0.0, 128
  %296 = vxpose.xlu0.b32.cont [6/16] 0.0, 128
  %297 = vxpose.xlu0.b32.cont [7/16] 0.0, 128
  %298 = vxpose.xlu0.b32.cont [8/16] 0.0, 128
  %299 = vxpose.xlu0.b32.cont [9/16] 0.0, 128
  %300 = vxpose.xlu0.b32.cont [10/16] 0.0, 128
  %301 = vxpose.xlu0.b32.cont [11/16] 0.0, 128
  %302 = vxpose.xlu0.b32.cont [12/16] 0.0, 128
  %303 = vxpose.xlu0.b32.cont [13/16] 0.0, 128
  %304 = vxpose.xlu0.b32.cont [14/16] 0.0, 128
  %305 = vxpose.xlu0.b32.cont [15/16] 0.0, 128
  %306 = vxpose.xlu0.b32.end [16/16] 0.0, 128
  %v307 = vpop.trf.xlu0
  %v308 = vpop.trf.xlu0
  %v309 = vpop.trf.xlu0
  %v310 = vpop.trf.xlu0
  %v311 = vpop.trf.xlu0
  %v312 = vpop.trf.xlu0
  %v313 = vpop.trf.xlu0
  %v314 = vpop.trf.xlu0
  %v315 = vpop.trf.xlu0
  %v316 = vpop.trf.xlu0
  %v317 = vpop.trf.xlu0
  %v318 = vpop.trf.xlu0
  %v319 = vpop.trf.xlu0
  %v320 = vpop.trf.xlu0
  %v321 = vpop.trf.xlu0
  %v322 = vpop.trf.xlu0
  %v324 = vsel %vm129, %v307, 0
  %v327 = vsel %vm129, %v308, 0
  %v330 = vsel %vm129, %v309, 0
  %v333 = vsel %vm129, %v310, 0
  %v336 = vsel %vm129, %v311, 0
  %v339 = vsel %vm129, %v312, 0
  %v342 = vsel %vm129, %v313, 0
  %v345 = vsel %vm129, %v314, 0
  %v348 = vsel %vm129, %v315, 0
  %v351 = vsel %vm129, %v316, 0
  %v354 = vsel %vm129, %v317, 0
  %v357 = vsel %vm129, %v318, 0
  %v360 = vsel %vm129, %v319, 0
  %v363 = vsel %vm129, %v320, 0
  %v366 = vsel %vm129, %v321, 0
  %v369 = vsel %vm129, %v322, 0
  %371 = vmatpush.msra.mxu0 0.0
  %372 = vmatpush.msra.mxu0 0.0
  %373 = vmatpush.msra.mxu0 0.0
  %374 = vmatpush.msra.mxu0 0.0
  %375 = vmatpush.msra.mxu0 0.0
  %376 = vmatpush.msra.mxu0 0.0
  %377 = vmatpush.msra.mxu0 0.0
  %378 = vmatpush.msra.mxu0 0.0
  %379 = vmatpush.msra.mxu0 0.0
  %380 = vmatpush.msra.mxu0 0.0
  %381 = vmatpush.msra.mxu0 0.0
  %382 = vmatpush.msra.mxu0 0.0
  %383 = vmatpush.msra.mxu0 0.0
  %384 = vmatpush.msra.mxu0 0.0
  %385 = vmatpush.msra.mxu0 0.0
  %386 = vmatpush.msra.mxu0 %v51
  %387 = vmatmul.f32.gmra.mxu0 %v324
  %v388 = vpop.f32.mrf.mxu0
  %v389 = vadd.f32 0.0, %v388
  %390 = vmatmul.f32.gmra.mxu0 %v327
  %v391 = vpop.f32.mrf.mxu0
  %v392 = vadd.f32 0.0, %v391
  %393 = vmatmul.f32.gmra.mxu0 %v330
  %v394 = vpop.f32.mrf.mxu0
  %v395 = vadd.f32 0.0, %v394
  %396 = vmatmul.f32.gmra.mxu0 %v333
  %v397 = vpop.f32.mrf.mxu0
  %v398 = vadd.f32 0.0, %v397
  %399 = vmatmul.f32.gmra.mxu0 %v336
  %v400 = vpop.f32.mrf.mxu0
  %v401 = vadd.f32 0.0, %v400
  %402 = vmatmul.f32.gmra.mxu0 %v339
  %v403 = vpop.f32.mrf.mxu0
  %v404 = vadd.f32 0.0, %v403
  %405 = vmatmul.f32.gmra.mxu0 %v342
  %v406 = vpop.f32.mrf.mxu0
  %v407 = vadd.f32 0.0, %v406
  %408 = vmatmul.f32.gmra.mxu0 %v345
  %v409 = vpop.f32.mrf.mxu0
  %v410 = vadd.f32 0.0, %v409
  %411 = vmatmul.f32.gmra.mxu0 %v348
  %v412 = vpop.f32.mrf.mxu0
  %v413 = vadd.f32 0.0, %v412
  %414 = vmatmul.f32.gmra.mxu0 %v351
  %v415 = vpop.f32.mrf.mxu0
  %v416 = vadd.f32 0.0, %v415
  %417 = vmatmul.f32.gmra.mxu0 %v354
  %v418 = vpop.f32.mrf.mxu0
  %v419 = vadd.f32 0.0, %v418
  %420 = vmatmul.f32.gmra.mxu0 %v357
  %v421 = vpop.f32.mrf.mxu0
  %v422 = vadd.f32 0.0, %v421
  %423 = vmatmul.f32.gmra.mxu0 %v360
  %v424 = vpop.f32.mrf.mxu0
  %v425 = vadd.f32 0.0, %v424
  %426 = vmatmul.f32.gmra.mxu0 %v363
  %v427 = vpop.f32.mrf.mxu0
  %v428 = vadd.f32 0.0, %v427
  %429 = vmatmul.f32.gmra.mxu0 %v366
  %v430 = vpop.f32.mrf.mxu0
  %v431 = vadd.f32 0.0, %v430
  %432 = vmatmul.f32.gmra.mxu0 %v369
  %v433 = vpop.f32.mrf.mxu0
  %v434 = vadd.f32 0.0, %v433
  %435 = vdwg.mxu0
  %v436 = vadd.f32 %v275, %v389
  %v437 = vadd.f32 %v276, %v392
  %v438 = vadd.f32 %v277, %v395
  %v439 = vadd.f32 %v278, %v398
  %v440 = vadd.f32 %v279, %v401
  %v441 = vadd.f32 %v280, %v404
  %v442 = vadd.f32 %v281, %v407
  %v443 = vadd.f32 %v282, %v410
  %v444 = vadd.f32 %v283, %v413
  %v445 = vadd.f32 %v284, %v416
  %v446 = vadd.f32 %v285, %v419
  %v447 = vadd.f32 %v286, %v422
  %v448 = vadd.f32 %v287, %v425
  %v449 = vadd.f32 %v288, %v428
  %v450 = vadd.f32 %v289, %v431
  %v451 = vadd.f32 %v290, %v434
  %452 = vst [vmem:[#allocation6] sm:$0xff] %v436
  %453 = vst [vmem:[#allocation6 + $0x8] sm:$0xff] %v437
  %454 = vst [vmem:[#allocation6 + $0x10] sm:$0xff] %v438
  %455 = vst [vmem:[#allocation6 + $0x18] sm:$0xff] %v439
  %456 = vst [vmem:[#allocation6 + $0x20] sm:$0xff] %v440
  %457 = vst [vmem:[#allocation6 + $0x28] sm:$0xff] %v441
  %458 = vst [vmem:[#allocation6 + $0x30] sm:$0xff] %v442
  %459 = vst [vmem:[#allocation6 + $0x38] sm:$0xff] %v443
  %460 = vst [vmem:[#allocation6 + $0x40] sm:$0xff] %v444
  %461 = vst [vmem:[#allocation6 + $0x48] sm:$0xff] %v445
  %462 = vst [vmem:[#allocation6 + $0x50] sm:$0xff] %v446
  %463 = vst [vmem:[#allocation6 + $0x58] sm:$0xff] %v447
  %464 = vst [vmem:[#allocation6 + $0x60] sm:$0xff] %v448
  %465 = vst [vmem:[#allocation6 + $0x68] sm:$0xff] %v449
  %466 = vst [vmem:[#allocation6 + $0x70] sm:$0xff] %v450
  %467 = vst [vmem:[#allocation6 + $0x78] sm:$0xff] %v451
  // Predicated region
  $region14: #{vic_loss.1} parent=0 // pred_check
    %p468 = pneg %p11
  $region15: #{vic_loss.1} parent=0 // pred_check_branch
    %470 = sbr.rel (%p468) target = $region17
  $region16: #{vic_loss.1} parent=0 // pred_region
    %v471 = vlaneseq
    %v472 = vand.u32 %v471, 127
    %vm473 = vcmp.lt.s32.totalorder %v472, 32
    %v474 = vlaneseq
    %v475 = vshrl.u32 %v474, 7
    %v476 = vadd.s32 %v475, 8
    %v477 = vadd.s32 %v475, 16
    %v478 = vadd.s32 %v475, 24
    %v479 = vadd.s32 %v475, 32
    %v480 = vadd.s32 %v475, 40
    %v481 = vadd.s32 %v475, 48
    %v482 = vadd.s32 %v475, 56
    %v483 = vadd.s32 %v475, 64
    %v484 = vadd.s32 %v475, 72
    %v485 = vadd.s32 %v475, 80
    %v486 = vadd.s32 %v475, 88
    %v487 = vadd.s32 %v475, 96
    %v488 = vadd.s32 %v475, 104
    %v489 = vadd.s32 %v475, 112
    %v490 = vadd.s32 %v475, 120
    %vm491 = vcmp.eq.s32.totalorder %v475, %v472
    %vm492 = vcmp.eq.s32.totalorder %v476, %v472
    %vm493 = vcmp.eq.s32.totalorder %v477, %v472
    %vm494 = vcmp.eq.s32.totalorder %v478, %v472
    %vm495 = vcmp.eq.s32.totalorder %v479, %v472
    %vm496 = vcmp.eq.s32.totalorder %v480, %v472
    %vm497 = vcmp.eq.s32.totalorder %v481, %v472
    %vm498 = vcmp.eq.s32.totalorder %v482, %v472
    %vm499 = vcmp.eq.s32.totalorder %v483, %v472
    %vm500 = vcmp.eq.s32.totalorder %v484, %v472
    %vm501 = vcmp.eq.s32.totalorder %v485, %v472
    %vm502 = vcmp.eq.s32.totalorder %v486, %v472
    %vm503 = vcmp.eq.s32.totalorder %v487, %v472
    %vm504 = vcmp.eq.s32.totalorder %v488, %v472
    %vm505 = vcmp.eq.s32.totalorder %v489, %v472
    %vm506 = vcmp.eq.s32.totalorder %v490, %v472
    %v507 = vld [vmem:[#allocation5] sm:$0xff]
    %v508 = vld [vmem:[#allocation5 + $0x8] sm:$0xff]
    %v509 = vld [vmem:[#allocation5 + $0x10] sm:$0xff]
    %v510 = vld [vmem:[#allocation5 + $0x18] sm:$0xff]
    %v511 = vld [vmem:[#allocation5 + $0x20] sm:$0xff]
    %v512 = vld [vmem:[#allocation5 + $0x28] sm:$0xff]
    %v513 = vld [vmem:[#allocation5 + $0x30] sm:$0xff]
    %v514 = vld [vmem:[#allocation5 + $0x38] sm:$0xff]
    %v515 = vld [vmem:[#allocation5 + $0x40] sm:$0xff]
    %v516 = vld [vmem:[#allocation5 + $0x48] sm:$0xff]
    %v517 = vld [vmem:[#allocation5 + $0x50] sm:$0xff]
    %v518 = vld [vmem:[#allocation5 + $0x58] sm:$0xff]
    %v519 = vld [vmem:[#allocation5 + $0x60] sm:$0xff]
    %v520 = vld [vmem:[#allocation5 + $0x68] sm:$0xff]
    %v521 = vld [vmem:[#allocation5 + $0x70] sm:$0xff]
    %v522 = vld [vmem:[#allocation5 + $0x78] sm:$0xff]
    %v523 = vld [vmem:[#allocation2] sm:$0x1]
    %v524 = vmul.f32 %v523, 0.125
    %v525 = vsel %vm491, %v507, 0.0
    %v526 = vsel %vm492, %v508, 0.0
    %v527 = vsel %vm493, %v509, 0.0
    %v528 = vsel %vm494, %v510, 0.0
    %v529 = vsel %vm495, %v511, 0.0
    %v530 = vsel %vm496, %v512, 0.0
    %v531 = vsel %vm497, %v513, 0.0
    %v532 = vsel %vm498, %v514, 0.0
    %v533 = vsel %vm499, %v515, 0.0
    %v534 = vsel %vm500, %v516, 0.0
    %v535 = vsel %vm501, %v517, 0.0
    %v536 = vsel %vm502, %v518, 0.0
    %v537 = vsel %vm503, %v519, 0.0
    %v538 = vsel %vm504, %v520, 0.0
    %v539 = vsel %vm505, %v521, 0.0
    %v540 = vsel %vm506, %v522, 0.0
    %v541 = vadd.f32 %v525, %v526
    %v542 = vadd.f32 %v541, %v527
    %v543 = vadd.f32 %v542, %v528
    %v544 = vadd.f32 %v543, %v529
    %v545 = vadd.f32 %v544, %v530
    %v546 = vadd.f32 %v545, %v531
    %v547 = vadd.f32 %v546, %v532
    %v548 = vadd.f32 %v547, %v533
    %v549 = vadd.f32 %v548, %v534
    %v550 = vadd.f32 %v549, %v535
    %v551 = vadd.f32 %v550, %v536
    %v552 = vadd.f32 %v551, %v537
    %v553 = vadd.f32 %v552, %v538
    %v554 = vadd.f32 %v553, %v539
    %v555 = vadd.f32 %v554, %v540
    %v556 = vrot.slane %v555, 4
    %v557 = vadd.f32 %v555, %v556
    %v558 = vrot.slane %v557, 2
    %v559 = vadd.f32 %v557, %v558
    %v560 = vrot.slane %v559, 1
    %v561 = vadd.f32 %v559, %v560
    %v562 = vmul.f32 %v523, %v524
    %v563 = vsub.f32 %v561, %v562
    %v564 = vmul.f32 %v563, 0.14285715
    %v565 = vadd.f32 %v564, 1e-05
    %v566 = vrsqrt.pop %v565
    %v567 = vmul.f32 %v566, %v565
    %v568 = vmul.f32 %v567, %v566
    %v569 = vmul.f32 0.5, %v568
    %v570 = vsub.f32 1.5, %v569
    %v571 = vmul.f32 %v566, %v570
    %v572 = vmul.f32 %v565, %v571
    %vm573 = vcmp.eq.f32.partialorder %v565, inf
    %v574 = vsel %vm573, %v565, %v572
    %vm575 = vcmp.eq.f32.partialorder %v565, 0.0
    %v576 = vand.u32 %v565, 2147483648
    %v577 = vsel %vm575, %v576, %v574
    %v578 = vsub.f32 1.0, %v577
    %v579 = vmax.f32 %v578, 0.0
    %v580 = vsel %vm473, %v579, 0.0
    %vm581 = vcmask 1040384
    %v582 = vsel %vm581, %v580, 0.0
    %583 = vadd.xlane.f32.xlu0 %v582
    %v584 = vpop.xlane.xlu0 %583
    %v585 = vrot.slane %v584, 4
    %v586 = vadd.f32 %v584, %v585
    %v587 = vrot.slane %v586, 2
    %v588 = vadd.f32 %v586, %v587
    %v589 = vrot.slane %v588, 1
    %v590 = vadd.f32 %v588, %v589
    %s591 = vtos %v590
    %v592 = vrcp.pop 32.0
    %v593 = vmul.f32 32.0, %v592
    %v594 = vsub.f32 1.0, %v593
    %v595 = vmul.f32 %v592, %v594
    %v596 = vadd.f32 %v592, %v595
    %vm597 = vweird.f32 %v592
    %v598 = vsel %vm597, %v592, %v596
    %s599 = vtos %v598
    %s600 = smul.f32 %s591, %s599
    %v601 = vmul.f32 %v507, %v507
    %v602 = vmul.f32 %v508, %v508
    %v603 = vmul.f32 %v509, %v509
    %v604 = vmul.f32 %v510, %v510
    %v605 = vmul.f32 %v511, %v511
    %v606 = vmul.f32 %v512, %v512
    %v607 = vmul.f32 %v513, %v513
    %v608 = vmul.f32 %v514, %v514
    %v609 = vmul.f32 %v515, %v515
    %v610 = vmul.f32 %v516, %v516
    %v611 = vmul.f32 %v517, %v517
    %v612 = vmul.f32 %v518, %v518
    %v613 = vmul.f32 %v519, %v519
    %v614 = vmul.f32 %v520, %v520
    %v615 = vmul.f32 %v521, %v521
    %v616 = vmul.f32 %v522, %v522
    %v617 = vadd.f32 %v601, %v602
    %v618 = vadd.f32 %v617, %v603
    %v619 = vadd.f32 %v618, %v604
    %v620 = vadd.f32 %v619, %v605
    %v621 = vadd.f32 %v620, %v606
    %v622 = vadd.f32 %v621, %v607
    %v623 = vadd.f32 %v622, %v608
    %v624 = vadd.f32 %v623, %v609
    %v625 = vadd.f32 %v624, %v610
    %v626 = vadd.f32 %v625, %v611
    %v627 = vadd.f32 %v626, %v612
    %v628 = vadd.f32 %v627, %v613
    %v629 = vadd.f32 %v628, %v614
    %v630 = vadd.f32 %v629, %v615
    %v631 = vadd.f32 %v630, %v616
    %632 = vadd.xlane.f32.xlu0 %v631
    %v633 = vpop.xlane.xlu0 %632
    %v634 = vrot.slane %v633, 4
    %v635 = vadd.f32 %v633, %v634
    %v636 = vrot.slane %v635, 2
    %v637 = vadd.f32 %v635, %v636
    %v638 = vrot.slane %v637, 1
    %v639 = vadd.f32 %v637, %v638
    %s640 = vtos %v639
    %641 = vmatpush.msra.mxu0 %v522
    %642 = vmatpush.msra.mxu0 %v521
    %643 = vmatpush.msra.mxu0 %v520
    %644 = vmatpush.msra.mxu0 %v519
    %645 = vmatpush.msra.mxu0 %v518
    %646 = vmatpush.msra.mxu0 %v517
    %647 = vmatpush.msra.mxu0 %v516
    %648 = vmatpush.msra.mxu0 %v515
    %649 = vmatpush.msra.mxu0 %v514
    %650 = vmatpush.msra.mxu0 %v513
    %651 = vmatpush.msra.mxu0 %v512
    %652 = vmatpush.msra.mxu0 %v511
    %653 = vmatpush.msra.mxu0 %v510
    %654 = vmatpush.msra.mxu0 %v509
    %655 = vmatpush.msra.mxu0 %v508
    %656 = vmatpush.msra.mxu0 %v507
    %657 = vmatmul.f32.gmra.mxu0 %v524
    %v658 = vpop.f32.mrf.mxu0
    %v659 = vadd.f32 0.0, %v658
    %660 = vdwg.mxu0
    %v661 = vmul.f32 %v659, %v524
    %v662 = vsel %vm581, %v661, 0.0
    %663 = vadd.xlane.f32.xlu0 %v662
    %v664 = vpop.xlane.xlu0 %663
    %v665 = vrot.slane %v664, 4
    %v666 = vadd.f32 %v664, %v665
    %v667 = vrot.slane %v666, 2
    %v668 = vadd.f32 %v666, %v667
    %v669 = vrot.slane %v668, 1
    %v670 = vadd.f32 %v668, %v669
    %s671 = vtos %v670
    %v672 = vmul.f32 %v524, %v524
    %v673 = vsel %vm581, %v672, 0.0
    %674 = vadd.xlane.f32.xlu0 %v673
    %v675 = vpop.xlane.xlu0 %674
    %v676 = vrot.slane %v675, 4
    %v677 = vadd.f32 %v675, %v676
    %v678 = vrot.slane %v677, 2
    %v679 = vadd.f32 %v677, %v678
    %v680 = vrot.slane %v679, 1
    %v681 = vadd.f32 %v679, %v680
    %s682 = vtos %v681
    %s683 = smul.f32 %s671, 16.0
    %s684 = ssub.f32 %s640, %s683
    %s685 = smul.f32 %s682, 8.0
    %s686 = smul.f32 %s685, %s685
    %s687 = sadd.f32 %s684, %s686
    %s688 = smul.f32 %s687, 0.020408163
    %v689 = vmul.f32 %v564, %v564
    %v690 = vsel %vm581, %v689, 0.0
    %691 = vadd.xlane.f32.xlu0 %v690
    %v692 = vpop.xlane.xlu0 %691
    %v693 = vrot.slane %v692, 4
    %v694 = vadd.f32 %v692, %v693
    %v695 = vrot.slane %v694, 2
    %v696 = vadd.f32 %v694, %v695
    %v697 = vrot.slane %v696, 1
    %v698 = vadd.f32 %v696, %v697
    %s699 = vtos %v698
    %s700 = ssub.f32 %s688, %s699
    %v701 = vrcp.pop 32.0
    %v702 = vmul.f32 32.0, %v701
    %v703 = vsub.f32 1.0, %v702
    %v704 = vmul.f32 %v701, %v703
    %v705 = vadd.f32 %v701, %v704
    %vm706 = vweird.f32 %v701
    %v707 = vsel %vm706, %v701, %v705
    %s708 = vtos %v707
    %s709 = smul.f32 %s700, %s708
    %v710 = vld [vmem:[#allocation6] sm:$0xff]
    %v711 = vld [vmem:[#allocation6 + $0x8] sm:$0xff]
    %v712 = vld [vmem:[#allocation6 + $0x10] sm:$0xff]
    %v713 = vld [vmem:[#allocation6 + $0x18] sm:$0xff]
    %v714 = vld [vmem:[#allocation6 + $0x20] sm:$0xff]
    %v715 = vld [vmem:[#allocation6 + $0x28] sm:$0xff]
    %v716 = vld [vmem:[#allocation6 + $0x30] sm:$0xff]
    %v717 = vld [vmem:[#allocation6 + $0x38] sm:$0xff]
    %v718 = vld [vmem:[#allocation6 + $0x40] sm:$0xff]
    %v719 = vld [vmem:[#allocation6 + $0x48] sm:$0xff]
    %v720 = vld [vmem:[#allocation6 + $0x50] sm:$0xff]
    %v721 = vld [vmem:[#allocation6 + $0x58] sm:$0xff]
    %v722 = vld [vmem:[#allocation6 + $0x60] sm:$0xff]
    %v723 = vld [vmem:[#allocation6 + $0x68] sm:$0xff]
    %v724 = vld [vmem:[#allocation6 + $0x70] sm:$0xff]
    %v725 = vld [vmem:[#allocation6 + $0x78] sm:$0xff]
    %v726 = vld [vmem:[#allocation3] sm:$0x1]
    %v727 = vmul.f32 %v726, 0.125
    %v728 = vsel %vm491, %v710, 0.0
    %v729 = vsel %vm492, %v711, 0.0
    %v730 = vsel %vm493, %v712, 0.0
    %v731 = vsel %vm494, %v713, 0.0
    %v732 = vsel %vm495, %v714, 0.0
    %v733 = vsel %vm496, %v715, 0.0
    %v734 = vsel %vm497, %v716, 0.0
    %v735 = vsel %vm498, %v717, 0.0
    %v736 = vsel %vm499, %v718, 0.0
    %v737 = vsel %vm500, %v719, 0.0
    %v738 = vsel %vm501, %v720, 0.0
    %v739 = vsel %vm502, %v721, 0.0
    %v740 = vsel %vm503, %v722, 0.0
    %v741 = vsel %vm504, %v723, 0.0
    %v742 = vsel %vm505, %v724, 0.0
    %v743 = vsel %vm506, %v725, 0.0
    %v744 = vadd.f32 %v728, %v729
    %v745 = vadd.f32 %v744, %v730
    %v746 = vadd.f32 %v745, %v731
    %v747 = vadd.f32 %v746, %v732
    %v748 = vadd.f32 %v747, %v733
    %v749 = vadd.f32 %v748, %v734
    %v750 = vadd.f32 %v749, %v735
    %v751 = vadd.f32 %v750, %v736
    %v752 = vadd.f32 %v751, %v737
    %v753 = vadd.f32 %v752, %v738
    %v754 = vadd.f32 %v753, %v739
    %v755 = vadd.f32 %v754, %v740
    %v756 = vadd.f32 %v755, %v741
    %v757 = vadd.f32 %v756, %v742
    %v758 = vadd.f32 %v757, %v743
    %v759 = vrot.slane %v758, 4
    %v760 = vadd.f32 %v758, %v759
    %v761 = vrot.slane %v760, 2
    %v762 = vadd.f32 %v760, %v761
    %v763 = vrot.slane %v762, 1
    %v764 = vadd.f32 %v762, %v763
    %v765 = vmul.f32 %v726, %v727
    %v766 = vsub.f32 %v764, %v765
    %v767 = vmul.f32 %v766, 0.14285715
    %v768 = vadd.f32 %v767, 1e-05
    %v769 = vrsqrt.pop %v768
    %v770 = vmul.f32 %v769, %v768
    %v771 = vmul.f32 %v770, %v769
    %v772 = vmul.f32 0.5, %v771
    %v773 = vsub.f32 1.5, %v772
    %v774 = vmul.f32 %v769, %v773
    %v775 = vmul.f32 %v768, %v774
    %vm776 = vcmp.eq.f32.partialorder %v768, inf
    %v777 = vsel %vm776, %v768, %v775
    %vm778 = vcmp.eq.f32.partialorder %v768, 0.0
    %v779 = vand.u32 %v768, 2147483648
    %v780 = vsel %vm778, %v779, %v777
    %v781 = vsub.f32 1.0, %v780
    %v782 = vmax.f32 %v781, 0.0
    %v783 = vsel %vm473, %v782, 0.0
    %v784 = vsel %vm581, %v783, 0.0
    %785 = vadd.xlane.f32.xlu0 %v784
    %v786 = vpop.xlane.xlu0 %785
    %v787 = vrot.slane %v786, 4
    %v788 = vadd.f32 %v786, %v787
    %v789 = vrot.slane %v788, 2
    %v790 = vadd.f32 %v788, %v789
    %v791 = vrot.slane %v790, 1
    %v792 = vadd.f32 %v790, %v791
    %s793 = vtos %v792
    %v794 = vrcp.pop 32.0
    %v795 = vmul.f32 32.0, %v794
    %v796 = vsub.f32 1.0, %v795
    %v797 = vmul.f32 %v794, %v796
    %v798 = vadd.f32 %v794, %v797
    %vm799 = vweird.f32 %v794
    %v800 = vsel %vm799, %v794, %v798
    %s801 = vtos %v800
    %s802 = smul.f32 %s793, %s801
    %v803 = vmul.f32 %v710, %v710
    %v804 = vmul.f32 %v711, %v711
    %v805 = vmul.f32 %v712, %v712
    %v806 = vmul.f32 %v713, %v713
    %v807 = vmul.f32 %v714, %v714
    %v808 = vmul.f32 %v715, %v715
    %v809 = vmul.f32 %v716, %v716
    %v810 = vmul.f32 %v717, %v717
    %v811 = vmul.f32 %v718, %v718
    %v812 = vmul.f32 %v719, %v719
    %v813 = vmul.f32 %v720, %v720
    %v814 = vmul.f32 %v721, %v721
    %v815 = vmul.f32 %v722, %v722
    %v816 = vmul.f32 %v723, %v723
    %v817 = vmul.f32 %v724, %v724
    %v818 = vmul.f32 %v725, %v725
    %v819 = vadd.f32 %v803, %v804
    %v820 = vadd.f32 %v819, %v805
    %v821 = vadd.f32 %v820, %v806
    %v822 = vadd.f32 %v821, %v807
    %v823 = vadd.f32 %v822, %v808
    %v824 = vadd.f32 %v823, %v809
    %v825 = vadd.f32 %v824, %v810
    %v826 = vadd.f32 %v825, %v811
    %v827 = vadd.f32 %v826, %v812
    %v828 = vadd.f32 %v827, %v813
    %v829 = vadd.f32 %v828, %v814
    %v830 = vadd.f32 %v829, %v815
    %v831 = vadd.f32 %v830, %v816
    %v832 = vadd.f32 %v831, %v817
    %v833 = vadd.f32 %v832, %v818
    %834 = vadd.xlane.f32.xlu0 %v833
    %v835 = vpop.xlane.xlu0 %834
    %v836 = vrot.slane %v835, 4
    %v837 = vadd.f32 %v835, %v836
    %v838 = vrot.slane %v837, 2
    %v839 = vadd.f32 %v837, %v838
    %v840 = vrot.slane %v839, 1
    %v841 = vadd.f32 %v839, %v840
    %s842 = vtos %v841
    %843 = vmatpush.msra.mxu0 %v725
    %844 = vmatpush.msra.mxu0 %v724
    %845 = vmatpush.msra.mxu0 %v723
    %846 = vmatpush.msra.mxu0 %v722
    %847 = vmatpush.msra.mxu0 %v721
    %848 = vmatpush.msra.mxu0 %v720
    %849 = vmatpush.msra.mxu0 %v719
    %850 = vmatpush.msra.mxu0 %v718
    %851 = vmatpush.msra.mxu0 %v717
    %852 = vmatpush.msra.mxu0 %v716
    %853 = vmatpush.msra.mxu0 %v715
    %854 = vmatpush.msra.mxu0 %v714
    %855 = vmatpush.msra.mxu0 %v713
    %856 = vmatpush.msra.mxu0 %v712
    %857 = vmatpush.msra.mxu0 %v711
    %858 = vmatpush.msra.mxu0 %v710
    %859 = vmatmul.f32.gmra.mxu0 %v727
    %v860 = vpop.f32.mrf.mxu0
    %v861 = vadd.f32 0.0, %v860
    %862 = vdwg.mxu0
    %v863 = vmul.f32 %v861, %v727
    %v864 = vsel %vm581, %v863, 0.0
    %865 = vadd.xlane.f32.xlu0 %v864
    %v866 = vpop.xlane.xlu0 %865
    %v867 = vrot.slane %v866, 4
    %v868 = vadd.f32 %v866, %v867
    %v869 = vrot.slane %v868, 2
    %v870 = vadd.f32 %v868, %v869
    %v871 = vrot.slane %v870, 1
    %v872 = vadd.f32 %v870, %v871
    %s873 = vtos %v872
    %v874 = vmul.f32 %v727, %v727
    %v875 = vsel %vm581, %v874, 0.0
    %876 = vadd.xlane.f32.xlu0 %v875
    %v877 = vpop.xlane.xlu0 %876
    %v878 = vrot.slane %v877, 4
    %v879 = vadd.f32 %v877, %v878
    %v880 = vrot.slane %v879, 2
    %v881 = vadd.f32 %v879, %v880
    %v882 = vrot.slane %v881, 1
    %v883 = vadd.f32 %v881, %v882
    %s884 = vtos %v883
    %s885 = smul.f32 %s873, 16.0
    %s886 = ssub.f32 %s842, %s885
    %s887 = smul.f32 %s884, 8.0
    %s888 = smul.f32 %s887, %s887
    %s889 = sadd.f32 %s886, %s888
    %s890 = smul.f32 %s889, 0.020408163
    %v891 = vmul.f32 %v767, %v767
    %v892 = vsel %vm581, %v891, 0.0
    %893 = vadd.xlane.f32.xlu0 %v892
    %v894 = vpop.xlane.xlu0 %893
    %v895 = vrot.slane %v894, 4
    %v896 = vadd.f32 %v894, %v895
    %v897 = vrot.slane %v896, 2
    %v898 = vadd.f32 %v896, %v897
    %v899 = vrot.slane %v898, 1
    %v900 = vadd.f32 %v898, %v899
    %s901 = vtos %v900
    %s902 = ssub.f32 %s890, %s901
    %v903 = vrcp.pop 32.0
    %v904 = vmul.f32 32.0, %v903
    %v905 = vsub.f32 1.0, %v904
    %v906 = vmul.f32 %v903, %v905
    %v907 = vadd.f32 %v903, %v906
    %vm908 = vweird.f32 %v903
    %v909 = vsel %vm908, %v903, %v907
    %s910 = vtos %v909
    %s911 = smul.f32 %s902, %s910
    %v912 = vld [vmem:[#allocation4] sm:$0x1]
    %v913 = vsel %vm581, %v912, 0.0
    %914 = vadd.xlane.f32.xlu0 %v913
    %v915 = vpop.xlane.xlu0 %914
    %v916 = vrot.slane %v915, 4
    %v917 = vadd.f32 %v915, %v916
    %v918 = vrot.slane %v917, 2
    %v919 = vadd.f32 %v917, %v918
    %v920 = vrot.slane %v919, 1
    %v921 = vadd.f32 %v919, %v920
    %s922 = vtos %v921
    %v923 = vrcp.pop 256.0
    %v924 = vmul.f32 256.0, %v923
    %v925 = vsub.f32 1.0, %v924
    %v926 = vmul.f32 %v923, %v925
    %v927 = vadd.f32 %v923, %v926
    %vm928 = vweird.f32 %v923
    %v929 = vsel %vm928, %v923, %v927
    %s930 = vtos %v929
    %s931 = smul.f32 %s922, %s930
    %s932 = sadd.f32 %s600, %s802
    %s933 = smul.f32 %s932, 0.5
    %s934 = sadd.f32 %s709, %s911
    %s935 = smul.f32 %s931, 25.0
    %s936 = smul.f32 %s933, 25.0
    %s937 = sadd.f32 %s935, %s936
    %s938 = sadd.f32 %s937, %s934
    %vm939 = vcmp.eq.s32.totalorder %v472, 0
    %v940 = vstv %s938
    %v941 = vsel %vm939, %v940, 0.0
    %vm942 = vcmp.eq.s32.totalorder %v472, 1
    %v943 = vstv %s931
    %v944 = vsel %vm942, %v943, %v941
    %vm945 = vcmp.eq.s32.totalorder %v472, 2
    %v946 = vstv %s933
    %v947 = vsel %vm945, %v946, %v944
    %vm948 = vcmp.eq.s32.totalorder %v472, 3
    %v949 = vstv %s934
    %v950 = vsel %vm948, %v949, %v947
    %951 = vst [vmem:[%s2] sm:$0x1] %v950
  $region17: #{vic_loss.1} parent=0 // pred_fallthru
    _
  // Predicated region
  $region18: #{vic_loss.1} parent=0 // pred_check
    _
  $region19: #{vic_loss.1} parent=0 // pred_check_branch
    %953 = sbr.rel (0) target = $region21
  $region20: #{vic_loss.1} parent=0 // pred_region
    _
  $region21: #{vic_loss.1} parent=0 // pred_fallthru
    _
  // Predicated region
  $region22: #{vic_loss.1} parent=0 // pred_check
    _
  $region23: #{vic_loss.1} parent=0 // pred_check_branch
    %955 = sbr.rel (0) target = $region25
  $region24: #{vic_loss.1} parent=0 // pred_region
    _
  $region25: #{vic_loss.1} parent=0 // pred_fallthru
    _

</llo_original>
